<compile_context>
chip_gen: v6e
topology: v6e:2x2x1
jax: 0.10.0
libtpu: 0.0.40
codegen_flags: <defaults>
</compile_context>

<pallas_src>
import functools

import jax
import jax.numpy as jnp
from jax.experimental import pallas as pl
from jax.experimental.pallas import tpu as pltpu

_EPS = 1e-5  # PyTorch BatchNorm default eps


def _round_up(x, m):
    return (x + m - 1) // m * m


# ----------------------------- Pallas kernels ------------------------------

def _mm_bias_kernel(*refs, relu, has_residual):
    """One (tm, tn) output tile of y = act(x @ w + bias [+ residual])."""
    if has_residual:
        x_ref, w_ref, b_ref, r_ref, o_ref, acc_ref = refs
    else:
        x_ref, w_ref, b_ref, o_ref, acc_ref = refs
    k = pl.program_id(2)

    @pl.when(k == 0)
    def _():
        acc_ref[...] = jnp.zeros_like(acc_ref)

    acc_ref[...] += jnp.dot(x_ref[...], w_ref[...],
                            preferred_element_type=jnp.float32)

    @pl.when(k == pl.num_programs(2) - 1)
    def _():
        y = acc_ref[...] + b_ref[...]
        if has_residual:
            y = y + r_ref[...]
        if relu:
            y = jnp.maximum(y, 0.0)
        o_ref[...] = y.astype(o_ref.dtype)


def matmul_bias_act(x, w, bias, relu=False, residual=None):
    """y = act(x @ w + bias [+ residual]); bias broadcasts over rows.

    x/w are cast to bf16 (native single-pass MXU dtype); accumulation is f32.
    Tile sizes are M-aware so the tiny-M deep layers and the head use a single
    8-row tile, and tk is up to 1152 so K is at most a few grid steps.
    """
    M, K = x.shape
    K2, N = w.shape
    assert K == K2
    Mp = _round_up(M, 8)
    Kp = _round_up(K, 128)
    Np = _round_up(N, 128)
    tm = min(Mp, 128)
    tk = min(Kp, 1152)   # 1152 = 9*128: 3x3x512 -> 4 K-steps, weight tile ~0.6 MiB bf16
    tn = min(Np, 256)    # 256-wide fills a v6e/v7x MXU pass; keeps >=2 N tiles at C=512
    Mp = _round_up(Mp, tm)
    Kp = _round_up(Kp, tk)
    Np = _round_up(Np, tn)

    xb = x.astype(jnp.bfloat16)
    if (Mp, Kp) != (M, K):
        xb = jnp.pad(xb, ((0, Mp - M), (0, Kp - K)))
    wb = w.astype(jnp.bfloat16)
    if (Kp, Np) != (K, N):
        wb = jnp.pad(wb, ((0, Kp - K), (0, Np - N)))
    bp = bias.reshape(1, N).astype(jnp.float32)
    if Np != N:
        bp = jnp.pad(bp, ((0, 0), (0, Np - N)))

    args = [xb, wb, bp]
    in_specs = [
        pl.BlockSpec((tm, tk), lambda i, j, k: (i, k)),
        pl.BlockSpec((tk, tn), lambda i, j, k: (k, j)),
        pl.BlockSpec((1, tn), lambda i, j, k: (0, j)),
    ]
    if residual is not None:
        rp = residual.astype(jnp.float32)
        if (Mp, Np) != (M, N):
            rp = jnp.pad(rp, ((0, Mp - M), (0, Np - N)))
        args.append(rp)
        # Index map independent of k -> fetched once per (i, j) output tile.
        in_specs.append(pl.BlockSpec((tm, tn), lambda i, j, k: (i, j)))

    grid = (Mp // tm, Np // tn, Kp // tk)
    out = pl.pallas_call(
        functools.partial(_mm_bias_kernel, relu=relu,
                          has_residual=residual is not None),
        out_shape=jax.ShapeDtypeStruct((Mp, Np), jnp.float32),
        grid_spec=pltpu.PrefetchScalarGridSpec(
            num_scalar_prefetch=0,
            grid=grid,
            in_specs=in_specs,
            out_specs=pl.BlockSpec((tm, tn), lambda i, j, k: (i, j)),
            scratch_shapes=[pltpu.VMEM((tm, tn), jnp.float32)],
        ),
        compiler_params=pltpu.CompilerParams(
            dimension_semantics=("parallel", "parallel", "arbitrary")),
    )(*args)
    if (Mp, Np) != (M, N):
        out = out[:M, :N]
    return out


def _maxpool_kernel(ee_ref, eo_ref, oe_ref, oo_ref, o_ref, *, OH, OW):
    """3x3/stride-2 max pool from even/odd row/column quadrants of the padded input.

    Quadrants: ee[i,j]=xp[2i,2j], eo=xp[2i,2j+1], oe=xp[2i+1,2j], oo=xp[2i+1,2j+1].
    All nine window taps become unit-stride slices of these four arrays.
    """
    ee = ee_ref[...]
    eo = eo_ref[...]
    oe = oe_ref[...]
    oo = oo_ref[...]
    m = ee[:, :OH, :OW, :]
    m = jnp.maximum(m, eo[:, :OH, :OW, :])
    m = jnp.maximum(m, ee[:, :OH, 1:OW + 1, :])
    m = jnp.maximum(m, oe[:, :OH, :OW, :])
    m = jnp.maximum(m, oo[:, :OH, :OW, :])
    m = jnp.maximum(m, oe[:, :OH, 1:OW + 1, :])
    m = jnp.maximum(m, ee[:, 1:OH + 1, :OW, :])
    m = jnp.maximum(m, eo[:, 1:OH + 1, :OW, :])
    m = jnp.maximum(m, ee[:, 1:OH + 1, 1:OW + 1, :])
    o_ref[...] = m


def _head_kernel(*refs, n_layers):
    """Fused projection head: all Linear(+BN)+ReLU layers and the output Linear
    in one VMEM-resident pass (weights are bf16, accumulation f32)."""
    x_ref = refs[0]
    o_ref = refs[-1]
    t = x_ref[...]
    for i in range(n_layers):
        w_ref = refs[1 + 2 * i]
        b_ref = refs[2 + 2 * i]
        t = jnp.dot(t.astype(w_ref.dtype), w_ref[...],
                    preferred_element_type=jnp.float32) + b_ref[...]
        if i < n_layers - 1:
            t = jnp.maximum(t, 0.0)
    o_ref[...] = t.astype(o_ref.dtype)


# ----------------------------- conv / pool glue -----------------------------

def _im2col(x, kh, kw, stride, pad):
    """x: NHWC (bf16) -> (N*OH*OW, kh*kw*C) patch matrix (plain-JAX glue)."""
    N, H, W, C = x.shape
    xp = jnp.pad(x, ((0, 0), (pad, pad), (pad, pad), (0, 0)))
    OH = (H + 2 * pad - kh) // stride + 1
    OW = (W + 2 * pad - kw) // stride + 1
    cols = []
    for i in range(kh):
        for j in range(kw):
            cols.append(xp[:, i:i + stride * (OH - 1) + 1:stride,
                              j:j + stride * (OW - 1) + 1:stride, :])
    patches = jnp.concatenate(cols, axis=-1)  # (N, OH, OW, kh*kw*C)
    return patches.reshape(N * OH * OW, kh * kw * C), OH, OW


def conv_bn(x, w, scale, bias, stride, pad, relu, residual=None):
    """Conv2d(bias=False) + folded eval-mode BatchNorm2d (+ ReLU, + residual).

    BN scale is folded into the conv weights; the Pallas matmul epilogue only
    adds the per-channel bias (and optional residual) before the ReLU.
    """
    kh, kw, cin, cout = w.shape
    wf = (w * scale.reshape(1, 1, 1, cout)).reshape(kh * kw * cin, cout)
    cols, OH, OW = _im2col(x.astype(jnp.bfloat16), kh, kw, stride, pad)
    res2d = residual.reshape(-1, cout) if residual is not None else None
    y = matmul_bias_act(cols, wf, bias, relu=relu, residual=res2d)
    return y.reshape(x.shape[0], OH, OW, cout)


def maxpool2d_3x3_s2_p1(x):
    """MaxPool2d(kernel=3, stride=2, padding=1); 9-way max runs in one Pallas kernel."""
    N, H, W, C = x.shape
    assert H % 2 == 0 and W % 2 == 0, "even spatial dims expected after the stem conv"
    neg = jnp.float32(-3e38)
    xp = jnp.pad(x, ((0, 0), (1, 1), (1, 1), (0, 0)), constant_values=neg)
    OH = (H + 2 - 3) // 2 + 1
    OW = (W + 2 - 3) // 2 + 1
    # Even/odd row/column quadrants (total volume == one copy of the padded input,
    # instead of 9 full-size shifted slices through HBM).
    ee = xp[:, 0::2, 0::2, :]
    eo = xp[:, 0::2, 1::2, :]
    oe = xp[:, 1::2, 0::2, :]
    oo = xp[:, 1::2, 1::2, :]
    out = pl.pallas_call(
        functools.partial(_maxpool_kernel, OH=OH, OW=OW),
        out_shape=jax.ShapeDtypeStruct((N, OH, OW, C), jnp.float32),
    )(ee, eo, oe, oo)
    return out


# ------------------------------ parameter init ------------------------------

def _conv_w(key, kh, kw, cin, cout):
    fan_in = kh * kw * cin
    return jax.random.normal(key, (kh, kw, cin, cout), jnp.float32) * (2.0 / fan_in) ** 0.5


def _bn_fold(key, n):
    # Eval-mode BatchNorm with running_mean=0, running_var=1 folded into
    # per-channel scale/bias.
    k1, k2 = jax.random.split(key)
    gamma = 1.0 + 0.1 * jax.random.normal(k1, (n,), jnp.float32)
    beta = 0.1 * jax.random.normal(k2, (n,), jnp.float32)
    scale = gamma / jnp.sqrt(1.0 + _EPS)
    return scale, beta


def init_resnet18_params(key):
    keys = iter(jax.random.split(key, 128))
    p = {"conv1_w": _conv_w(next(keys), 7, 7, 3, 64),
         "bn1": _bn_fold(next(keys), 64)}
    blocks = []
    cfg = [(64, 1), (128, 2), (256, 2), (512, 2)]
    cin = 64
    for cout, first_stride in cfg:
        for b in range(2):
            stride = first_stride if b == 0 else 1
            blk = {
                "conv1_w": _conv_w(next(keys), 3, 3, cin, cout),
                "bn1": _bn_fold(next(keys), cout),
                "conv2_w": _conv_w(next(keys), 3, 3, cout, cout),
                "bn2": _bn_fold(next(keys), cout),
                "stride": stride,
            }
            if b == 0 and (stride != 1 or cin != cout):
                blk["down_w"] = _conv_w(next(keys), 1, 1, cin, cout)
                blk["down_bn"] = _bn_fold(next(keys), cout)
            blocks.append(blk)
            cin = cout
    p["blocks"] = blocks
    return p


def init_head_params(key, head_layers=(512, 128), num_classes=3):
    keys = iter(jax.random.split(key, 32))
    layers = []
    last = 512
    for n in head_layers:
        w = jax.random.normal(next(keys), (last, n), jnp.float32) * (1.0 / last) ** 0.5
        b = 0.01 * jax.random.normal(next(keys), (n,), jnp.float32)
        bn_s, bn_b = _bn_fold(next(keys), n)
        layers.append({"w": w, "b": b, "bn_s": bn_s, "bn_b": bn_b})
        last = n
    out_w = jax.random.normal(next(keys), (last, num_classes), jnp.float32) * (1.0 / last) ** 0.5
    out_b = 0.01 * jax.random.normal(next(keys), (num_classes,), jnp.float32)
    return {"layers": layers, "out_w": out_w, "out_b": out_b}


# ------------------------------- forward pass --------------------------------

def resnet18_forward(x_nchw, p):
    x = jnp.transpose(x_nchw, (0, 2, 3, 1))  # NCHW -> NHWC
    s, b = p["bn1"]
    x = conv_bn(x, p["conv1_w"], s, b, stride=2, pad=3, relu=True)
    x = maxpool2d_3x3_s2_p1(x)
    for blk in p["blocks"]:
        identity = x
        s1, b1 = blk["bn1"]
        s2, b2 = blk["bn2"]
        out = conv_bn(x, blk["conv1_w"], s1, b1, blk["stride"], 1, relu=True)
        if "down_w" in blk:
            ds, db = blk["down_bn"]
            identity = conv_bn(x, blk["down_w"], ds, db, blk["stride"], 0, relu=False)
        # conv2 + BN + residual add + ReLU, all fused into one matmul epilogue.
        x = conv_bn(out, blk["conv2_w"], s2, b2, 1, 1, relu=True, residual=identity)
    # nn.AdaptiveAvgPool2d((1,1)) + flatten; fc is Identity -> 512-d embeddings.
    embeds = jnp.mean(x, axis=(1, 2))  # glue reduction (trivial at 1x1 spatial)
    return embeds


def projection_net_forward(x_nchw, resnet_p, head_p):
    embeds = resnet18_forward(x_nchw, resnet_p)

    # Fused projection head: Linear bias + eval-mode BatchNorm1d folded into
    # (W * bn_s, b * bn_s + bn_b); everything runs in a single Pallas kernel.
    M, d0 = embeds.shape
    Mp = _round_up(M, 8)
    mats = []
    for layer in head_p["layers"]:
        wf = layer["w"] * layer["bn_s"].reshape(1, -1)
        bf = layer["b"] * layer["bn_s"] + layer["bn_b"]
        mats.append((wf, bf))
    mats.append((head_p["out_w"], head_p["out_b"]))

    dims = [d0] + [w.shape[1] for (w, _) in mats]
    dims_p = [_round_up(d, 128) for d in dims]

    xh = embeds.astype(jnp.bfloat16)
    xh = jnp.pad(xh, ((0, Mp - M), (0, dims_p[0] - dims[0])))

    args = [xh]
    for i, (wf, bf) in enumerate(mats):
        kin, kout = wf.shape
        wfp = jnp.pad(wf.astype(jnp.bfloat16),
                      ((0, dims_p[i] - kin), (0, dims_p[i + 1] - kout)))
        bfp = jnp.pad(bf.reshape(1, -1).astype(jnp.float32),
                      ((0, 0), (0, dims_p[i + 1] - kout)))
        args += [wfp, bfp]

    logits_p = pl.pallas_call(
        functools.partial(_head_kernel, n_layers=len(mats)),
        out_shape=jax.ShapeDtypeStruct((Mp, dims_p[-1]), jnp.float32),
    )(*args)
    logits = logits_p[:M, :dims[-1]]
    return embeds, logits


if __name__ == "__main__":
    key = jax.random.PRNGKey(0)
    k_in, k_res, k_head = jax.random.split(key, 3)
    # Small image consistent with resnet18's forward (3 input channels).
    x = jax.random.normal(k_in, (2, 3, 32, 32), jnp.float32)  # NCHW
    resnet_params = init_resnet18_params(k_res)
    head_params = init_head_params(k_head, head_layers=(512, 128), num_classes=3)

    embeds, logits = projection_net_forward(x, resnet_params, head_params)
    embeds, logits = jax.block_until_ready((embeds, logits))

    assert embeds.shape == (2, 512) and embeds.dtype == jnp.float32
    assert logits.shape == (2, 3) and logits.dtype == jnp.float32
    assert bool(jnp.all(jnp.isfinite(embeds))) and bool(jnp.all(jnp.isfinite(logits)))
    print("KERNEL_OK")
</pallas_src>

<mosaic_0001>
module attributes {stable_mosaic.version = 11 : i64} {
  func.func @_mm_bias_kernel(%arg0: i32, %arg1: i32, %arg2: i32, %arg3: memref<128x256xbf16, #tpu.memory_space<vmem>>, %arg4: memref<256x128xbf16, #tpu.memory_space<vmem>>, %arg5: memref<1x128xf32, #tpu.memory_space<vmem>>, %arg6: memref<128x128xf32, #tpu.memory_space<vmem>>, %arg7: memref<128x128xf32, #tpu.memory_space<vmem>>) attributes {dimension_semantics = [#tpu.dimension_semantics<parallel>, #tpu.dimension_semantics<parallel>, #tpu.dimension_semantics<arbitrary>], iteration_bounds = array<i64: 4, 1, 1>, scalar_prefetch = 0 : i64, scratch_operands = 1 : i64, tpu.core_type = #tpu.core_type<tc>, window_params = [{transform_indices = @transform_0, window_bounds = array<i64: 128, 256>}, {transform_indices = @transform_1, window_bounds = array<i64: 256, 128>}, {transform_indices = @transform_2, window_bounds = array<i64: 1, 128>}, {transform_indices = @transform_3, window_bounds = array<i64: 128, 128>}]} {
    %c0_i32 = arith.constant 0 : i32
    %0 = arith.cmpi eq, %arg2, %c0_i32 : i32
    %1 = arith.extui %0 : i1 to i32
    %c0_i32_0 = arith.constant 0 : i32
    %2 = arith.cmpi ne, %1, %c0_i32_0 : i32
    scf.if %2 {
      %cst_10 = arith.constant 0.000000e+00 : f32
      %12 = vector.broadcast %cst_10 : f32 to vector<128x128xf32>
      %c0_11 = arith.constant 0 : index
      %c0_12 = arith.constant 0 : index
      %13 = vector.load %arg7[%c0_11, %c0_12] : memref<128x128xf32, #tpu.memory_space<vmem>>, vector<128x128xf32>
      tpu.vector_store %arg7[%c0_11, %c0_12], %12 {strides = array<i32>} : memref<128x128xf32, #tpu.memory_space<vmem>>, vector<128x128xf32>,
    } else {
    }
    %c0 = arith.constant 0 : index
    %c0_1 = arith.constant 0 : index
    %3 = vector.load %arg7[%c0, %c0_1] : memref<128x128xf32, #tpu.memory_space<vmem>>, vector<128x128xf32>
    %c0_2 = arith.constant 0 : index
    %c0_3 = arith.constant 0 : index
    %4 = vector.load %arg3[%c0_2, %c0_3] : memref<128x256xbf16, #tpu.memory_space<vmem>>, vector<128x256xbf16>
    %c0_4 = arith.constant 0 : index
    %c0_5 = arith.constant 0 : index
    %5 = vector.load %arg4[%c0_4, %c0_5] : memref<256x128xbf16, #tpu.memory_space<vmem>>, vector<256x128xbf16>
    %cst = arith.constant dense<0.000000e+00> : vector<128x128xf32>
    %6 = tpu.matmul %4, %5, %cst {dimension_numbers = #tpu.dot_dimension_numbers<[1], [0], [0], [1], [0, 0, 1, 1], [], []>} : vector<128x256xbf16>, vector<256x128xbf16>, vector<128x128xf32> -> vector<128x128xf32>
    %7 = arith.addf %3, %6 : vector<128x128xf32>
    %c0_6 = arith.constant 0 : index
    %c0_7 = arith.constant 0 : index
    %8 = vector.load %arg7[%c0_6, %c0_7] : memref<128x128xf32, #tpu.memory_space<vmem>>, vector<128x128xf32>
    tpu.vector_store %arg7[%c0_6, %c0_7], %7 {strides = array<i32>} : memref<128x128xf32, #tpu.memory_space<vmem>>, vector<128x128xf32>,
    %c0_i32_8 = arith.constant 0 : i32
    %9 = arith.cmpi eq, %arg2, %c0_i32_8 : i32
    %10 = arith.extui %9 : i1 to i32
    %c0_i32_9 = arith.constant 0 : i32
    %11 = arith.cmpi ne, %10, %c0_i32_9 : i32
    scf.if %11 {
      %c0_10 = arith.constant 0 : index
      %c0_11 = arith.constant 0 : index
      %12 = vector.load %arg7[%c0_10, %c0_11] : memref<128x128xf32, #tpu.memory_space<vmem>>, vector<128x128xf32>
      %c0_12 = arith.constant 0 : index
      %c0_13 = arith.constant 0 : index
      %13 = vector.load %arg5[%c0_12, %c0_13] : memref<1x128xf32, #tpu.memory_space<vmem>>, vector<1x128xf32>
      %14 = vector.broadcast %13 : vector<1x128xf32> to vector<128x128xf32>
      %15 = arith.addf %12, %14 : vector<128x128xf32>
      %cst_14 = arith.constant 0.000000e+00 : f32
      %16 = vector.broadcast %cst_14 : f32 to vector<128x128xf32>
      %17 = arith.maximumf %15, %16 : vector<128x128xf32>
      %c0_15 = arith.constant 0 : index
      %c0_16 = arith.constant 0 : index
      %18 = vector.load %arg6[%c0_15, %c0_16] : memref<128x128xf32, #tpu.memory_space<vmem>>, vector<128x128xf32>
      tpu.vector_store %arg6[%c0_15, %c0_16], %17 {strides = array<i32>} : memref<128x128xf32, #tpu.memory_space<vmem>>, vector<128x128xf32>,
    } else {
    }
    return
  }
  func.func @transform_0(%arg0: i32, %arg1: i32, %arg2: i32) -> (i32, i32) {
    %c0_i32 = arith.constant 0 : i32
    return %arg0, %arg2 : i32, i32
  }
  func.func @transform_1(%arg0: i32, %arg1: i32, %arg2: i32) -> (i32, i32) {
    %c0_i32 = arith.constant 0 : i32
    return %arg2, %arg1 : i32, i32
  }
  func.func @transform_2(%arg0: i32, %arg1: i32, %arg2: i32) -> (i32, i32) {
    %c0_i32 = arith.constant 0 : i32
    %c0_i32_0 = arith.constant 0 : i32
    return %c0_i32, %arg1 : i32, i32
  }
  func.func @transform_3(%arg0: i32, %arg1: i32, %arg2: i32) -> (i32, i32) {
    %c0_i32 = arith.constant 0 : i32
    return %arg0, %arg1 : i32, i32
  }
}

</mosaic_0001>

<llo_original>
// kernel: tpu_custom_call.1
$region0: #{tpu_custom_call.1}
  #allocation0 [shape = 'u32[]', space=smem, size = 0x4, offset = 0x4, fixed_abs, tag = 'smem constant byte address 0x4 - core index']
  #allocation1 [shape = 'u32[144,128]{1,0:T(1,128)}', space=vmem, size = 0x12000, scoped, tag = 'internal scratch']
  #allocation2 [shape = 'f32[128,128]{1,0:T(8,128)}', space=vmem, size = 0x10000, scoped, tag = 'scratch operand']
  %s0 = inlined_call_operand.hbm [shape: bf16[512,256], index: 0, kind: input, shape index: {}]
  %s1 = inlined_call_operand.hbm [shape: bf16[256,128], index: 1, kind: input, shape index: {}]
  %s2 = inlined_call_operand.vmem [shape: f32[1,128], index: 2, kind: input, shape index: {}]
  %s3 = inlined_call_operand.hbm [shape: f32[512,128], index: 3, kind: output, shape index: {}]
  %s4 = sld [smem:[#allocation0]]
  $region61: #{tpu_custom_call.1} parent=0
    _
  %s6 = ssub.s32 1, %s4
  %s7 = scalar_select 0, %s6, %s4
  $region1: #{tpu_custom_call.1} parent=0
    #allocation3 [shape = 'u8[131072]{0}', space=vmem, size = 0x20000, scoped, tag = 'input window, operand 0']
    #allocation4 [shape = 's32[2]{0}', space=sflag, size = 0x8, scoped, tag = 'scoped memory for tpu_custom_call.1']
    #allocation5 [shape = 's32[2]{0}', space=sflag, size = 0x8, scoped, tag = 'scoped memory for tpu_custom_call.1']
    #allocation6 [shape = 'u8[65536]{0}', space=vmem, size = 0x10000, scoped, tag = 'input window, operand 1, single buffered']
    #allocation7 [shape = 's32[1]{0}', space=sflag, size = 0x4, scoped, tag = 'scoped memory for tpu_custom_call.1']
    #allocation8 [shape = 'u8[131072]{0}', space=vmem, size = 0x20000, scoped, tag = 'output window, operand 0']
    %8 = vsyncpa [#allocation4], 0
    %s9 = scalar_lea.sflag [#allocation4], 1
    %10 = vsyncpa %s9, 0
    %11 = vsyncpa [#allocation7], 0
    %12 = vsyncpa [#allocation5], 0
    %s13 = scalar_lea.sflag [#allocation5], 1
    %14 = vsyncpa %s13, 0
    loop: start=0, step=1, limit=6
    $region2: #{tpu_custom_call.1} parent=1 // loop_pre_header
      _
    $region3: #{tpu_custom_call.1} parent=1 // loop_header
      %s16 = sphi 0, %s20
      %p17 = scmp.ge.s32.totalorder %s16, 6
      %s23 = sphi 0, %s42
      %s24 = sphi 0, %s38
      %s25 = sphi 0, %s34
      %s26 = sphi 0, %s23
      %s27 = sphi 0, %s24
      %s28 = sphi 0, %s25
      %s29 = sphi 0, %s26
      %s30 = sphi 0, %s27
      %s31 = sphi 0, %s28
      %s47 = sphi 0, %s49
      %s50 = sphi 0, %s47
      %s51 = sphi 0, %s50
      %s67 = sphi 0, %s51
      %s75 = sphi 0, %s77
      %s78 = sphi 0, %s75
      %s79 = sphi 0, %s78
      %s95 = sphi 0, %s79
      %s101 = sphi 0, %s103
      %s104 = sphi 0, %s101
      %s105 = sphi 0, %s104
      %s121 = sphi 0, %s105
      %s129 = sphi 0, %s131
      %s132 = sphi 0, %s129
      %s133 = sphi 0, %s132
      %s149 = sphi 0, %s133
    $region4: #{tpu_custom_call.1} parent=1 // loop_header_branch
      %19 = sbr.rel (%p17) target = $region8
    $region5: #{tpu_custom_call.1} parent=1 // loop_body
      %s21 = ssub.s32 %s16, 1
      %s22 = ssub.s32 %s16, 2
      %s32 = sadd.s32 1, %s25
      %p33 = scmp.ge.s32.totalorder %s32, 1
      %s34 = scalar_select %p33, 0, %s32
      %s35 = sadd.s32 1, %s24
      %s36 = scalar_select %p33, %s35, %s24
      %p37 = scmp.ge.s32.totalorder %s36, 1
      %s38 = scalar_select %p37, 0, %s36
      %s39 = sadd.s32 1, %s23
      %s40 = scalar_select %p37, %s39, %s23
      %p41 = scmp.ge.s32.totalorder %s40, 4
      %s42 = scalar_select %p41, 0, %s40
      %s43 = ssub.s32 %s23, %s42
      %s44 = ssub.s32 %s25, %s34
      %s45 = sor.u32 %s43, %s44
      %p46 = scmp.eq.s32.totalorder %s45, 0
      %s48 = sadd.s32 %s47, 1
      %s49 = scalar_select %p46, %s47, %s48
      %p52 = pneg %p46
      %p53 = scmp.eq.s32.totalorder %s16, 3
      %p54 = por %p52, %p53
      %p55 = scmp.ne.s32.totalorder %s47, %s50
      %p56 = scmp.eq.s32.totalorder %s16, 0
      %p57 = por %p55, %p56
      %p58 = scmp.ne.s32.totalorder %s47, %s50
      %p59 = scmp.eq.s32.totalorder %s21, 3
      %p60 = por %p58, %p59
      %p61 = scmp.ne.s32.totalorder %s50, %s51
      %p62 = scmp.eq.s32.totalorder %s21, 0
      %p63 = por %p61, %p62
      %p64 = scmp.ne.s32.totalorder %s50, %s51
      %p65 = scmp.eq.s32.totalorder %s22, 3
      %p66 = por %p64, %p65
      %p68 = scmp.ne.s32.totalorder %s51, %s67
      %p69 = scmp.eq.s32.totalorder %s22, 0
      %p70 = por %p68, %p69
      %s71 = ssub.s32 %s25, %s34
      %s72 = ssub.s32 %s24, %s38
      %s73 = sor.u32 %s71, %s72
      %p74 = scmp.eq.s32.totalorder %s73, 0
      %s76 = sadd.s32 %s75, 1
      %s77 = scalar_select %p74, %s75, %s76
      %p80 = pneg %p74
      %p81 = scmp.eq.s32.totalorder %s16, 3
      %p82 = por %p80, %p81
      %p83 = scmp.ne.s32.totalorder %s75, %s78
      %p84 = scmp.eq.s32.totalorder %s16, 0
      %p85 = por %p83, %p84
      %p86 = scmp.ne.s32.totalorder %s75, %s78
      %p87 = scmp.eq.s32.totalorder %s21, 3
      %p88 = por %p86, %p87
      %p89 = scmp.ne.s32.totalorder %s78, %s79
      %p90 = scmp.eq.s32.totalorder %s21, 0
      %p91 = por %p89, %p90
      %p92 = scmp.ne.s32.totalorder %s78, %s79
      %p93 = scmp.eq.s32.totalorder %s22, 3
      %p94 = por %p92, %p93
      %p96 = scmp.ne.s32.totalorder %s79, %s95
      %p97 = scmp.eq.s32.totalorder %s22, 0
      %p98 = por %p96, %p97
      %s99 = ssub.s32 %s24, %s38
      %p100 = scmp.eq.s32.totalorder %s99, 0
      %s102 = sadd.s32 %s101, 1
      %s103 = scalar_select %p100, %s101, %s102
      %p106 = pneg %p100
      %p107 = scmp.eq.s32.totalorder %s16, 3
      %p108 = por %p106, %p107
      %p109 = scmp.ne.s32.totalorder %s101, %s104
      %p110 = scmp.eq.s32.totalorder %s16, 0
      %p111 = por %p109, %p110
      %p112 = scmp.ne.s32.totalorder %s101, %s104
      %p113 = scmp.eq.s32.totalorder %s21, 3
      %p114 = por %p112, %p113
      %p115 = scmp.ne.s32.totalorder %s104, %s105
      %p116 = scmp.eq.s32.totalorder %s21, 0
      %p117 = por %p115, %p116
      %p118 = scmp.ne.s32.totalorder %s104, %s105
      %p119 = scmp.eq.s32.totalorder %s22, 3
      %p120 = por %p118, %p119
      %p122 = scmp.ne.s32.totalorder %s105, %s121
      %p123 = scmp.eq.s32.totalorder %s22, 0
      %p124 = por %p122, %p123
      %s125 = ssub.s32 %s23, %s42
      %s126 = ssub.s32 %s24, %s38
      %s127 = sor.u32 %s125, %s126
      %p128 = scmp.eq.s32.totalorder %s127, 0
      %s130 = sadd.s32 %s129, 1
      %s131 = scalar_select %p128, %s129, %s130
      %p134 = pneg %p128
      %p135 = scmp.eq.s32.totalorder %s16, 3
      %p136 = por %p134, %p135
      %p137 = scmp.ne.s32.totalorder %s129, %s132
      %p138 = scmp.eq.s32.totalorder %s16, 0
      %p139 = por %p137, %p138
      %p140 = scmp.ne.s32.totalorder %s129, %s132
      %p141 = scmp.eq.s32.totalorder %s21, 3
      %p142 = por %p140, %p141
      %p143 = scmp.ne.s32.totalorder %s132, %s133
      %p144 = scmp.eq.s32.totalorder %s21, 0
      %p145 = por %p143, %p144
      %p146 = scmp.ne.s32.totalorder %s132, %s133
      %p147 = scmp.eq.s32.totalorder %s22, 3
      %p148 = por %p146, %p147
      %p150 = scmp.ne.s32.totalorder %s133, %s149
      %p151 = scmp.eq.s32.totalorder %s22, 0
      %p152 = por %p150, %p151
      %p153 = scmp.le.s32.totalorder 1, %s16
      %p154 = scmp.lt.s32.totalorder %s16, 5
      %p155 = pnand %p153, %p154
      %p156 = pneg %p155
      // Predicated region
      $region9: #{tpu_custom_call.1} parent=5 // pred_check
        _
      $region10: #{tpu_custom_call.1} parent=5 // pred_check_branch
        %158 = sbr.rel (%p155) target = $region12
      $region11: #{tpu_custom_call.1} parent=5 // pred_region
        %s159 = ssub.s32 %s16, 1
        // Predicated region
        $region13: #{tpu_custom_call.1} parent=11 // pred_check
          %p160 = pneg %p91
        $region14: #{tpu_custom_call.1} parent=11 // pred_check_branch
          %162 = sbr.rel (%p160) target = $region16
        $region15: #{tpu_custom_call.1} parent=11 // pred_region
          %s163 = smul.u32 32, %s28
          %s165 = ssub.s32 2048, 2048
          %166 = vsyncadd [#allocation7], %s165
          %s167 = sadd.s32 %s27, %s163
          %s168 = smul.addr %s167, 64
          %s169 = scalar_lea.hbm %s1, %s168
          %s170 = sshll.u32 [#allocation6], 4
          %s171 = int_to_ptr.vmem [resolvable:$true] %s170
          %176 = dma.hbm_to_vmem [thread:$0]  %s169, 2048, %s171, [#allocation7], 64, 64, 4
        $region16: #{tpu_custom_call.1} parent=11 // pred_fallthru
          _
        // Predicated region
        $region17: #{tpu_custom_call.1} parent=11 // pred_check
          %p177 = pneg %p117
        $region18: #{tpu_custom_call.1} parent=11 // pred_check_branch
          %179 = sbr.rel (%p177) target = $region20
        $region19: #{tpu_custom_call.1} parent=11 // pred_region
          %p180 = scmp.lt.s32.totalorder %s27, 0
          %s181 = scalar_select %p180, %s27, 0
          %s182 = scalar_lea.vmem %s2, %s181
        $region20: #{tpu_custom_call.1} parent=11 // pred_fallthru
          _
      $region12: #{tpu_custom_call.1} parent=5 // pred_fallthru
        _
      %p183 = scmp.lt.s32.totalorder %s16, 4
      // Predicated region
      $region21: #{tpu_custom_call.1} parent=5 // pred_check
        %p184 = pneg %p183
      $region22: #{tpu_custom_call.1} parent=5 // pred_check_branch
        %186 = sbr.rel (%p184) target = $region24
      $region23: #{tpu_custom_call.1} parent=5 // pred_region
        // Predicated region
        $region25: #{tpu_custom_call.1} parent=23 // pred_check
          %p187 = pneg %p57
        $region26: #{tpu_custom_call.1} parent=23 // pred_check_branch
          %189 = sbr.rel (%p187) target = $region28
        $region27: #{tpu_custom_call.1} parent=23 // pred_region
          %s190 = sand.u32 %s47, 1
          %s191 = scalar_lea.sflag [#allocation4], %s190
          %s192 = sand.u32 %s47, 1
          %s193 = smul.addr %s192, 128
          %s194 = scalar_lea.vmem [#allocation3], %s193
          %s195 = smul.u32 16, %s23
          %s196 = smul.u32 2, %s25
          %s198 = ssub.s32 2048, 2048
          %199 = vsyncadd %s191, %s198
          %s200 = smul.addr %s195, 2
          %s201 = sadd.s32 %s196, %s200
          %s202 = smul.addr %s201, 64
          %s203 = scalar_lea.hbm %s0, %s202
          %s204 = sshll.u32 %s194, 4
          %s205 = int_to_ptr.vmem [resolvable:$true] %s204
          %210 = dma.hbm_to_vmem [thread:$0]  %s203, 2048, %s205, %s191, 128, 128, 8
        $region28: #{tpu_custom_call.1} parent=23 // pred_fallthru
          _
      $region24: #{tpu_custom_call.1} parent=5 // pred_fallthru
        _
      %p211 = scmp.le.s32.totalorder 1, %s16
      %p212 = scmp.lt.s32.totalorder %s16, 5
      %p213 = pnand %p211, %p212
      %p214 = pneg %p213
      // Predicated region
      $region29: #{tpu_custom_call.1} parent=5 // pred_check
        _
      $region30: #{tpu_custom_call.1} parent=5 // pred_check_branch
        %216 = sbr.rel (%p213) target = $region32
      $region31: #{tpu_custom_call.1} parent=5 // pred_region
        %s217 = ssub.s32 %s16, 1
        %s218 = sand.u32 %s50, 1
        %s219 = scalar_lea.sflag [#allocation4], %s218
        %s220 = sand.u32 %s50, 1
        %s221 = smul.addr %s220, 128
        %s222 = scalar_lea.vmem [#allocation3], %s221
        // Predicated region
        $region33: #{tpu_custom_call.1} parent=31 // pred_check
          %p223 = pneg %p63
        $region34: #{tpu_custom_call.1} parent=31 // pred_check_branch
          %225 = sbr.rel (%p223) target = $region36
        $region35: #{tpu_custom_call.1} parent=31 // pred_region
          %226 = dma.done %s219, 2048
        $region36: #{tpu_custom_call.1} parent=31 // pred_fallthru
          _
        // Predicated region
        $region37: #{tpu_custom_call.1} parent=31 // pred_check
          %p227 = pneg %p91
        $region38: #{tpu_custom_call.1} parent=31 // pred_check_branch
          %229 = sbr.rel (%p227) target = $region40
        $region39: #{tpu_custom_call.1} parent=31 // pred_region
          %230 = dma.done [#allocation7], 2048
        $region40: #{tpu_custom_call.1} parent=31 // pred_fallthru
          _
        %s231 = sand.u32 %s50, 1
        %s232 = scalar_lea.sflag [#allocation4], %s231
        %s233 = sand.u32 %s50, 1
        %s234 = smul.addr %s233, 128
        %s235 = scalar_lea.vmem [#allocation3], %s234
        %p236 = pneg %p63
        %p237 = pneg %p60
        %p238 = pneg %p91
        %p239 = pneg %p88
        %p240 = scmp.lt.s32.totalorder %s27, 0
        %s241 = scalar_select %p240, %s27, 0
        %s242 = scalar_lea.vmem %s2, %s241
        %p243 = pneg %p117
        %p244 = pneg %p114
        %p245 = pneg %p145
        %p246 = pneg %p142
        %s247 = sand.u32 %s132, 1
        %s248 = scalar_lea.sflag [#allocation5], %s247
        %s249 = sand.u32 %s132, 1
        %s250 = smul.addr %s249, 128
        %s251 = scalar_lea.vmem [#allocation8], %s250
        %s252 = smul.u32 16, %s26
        %s253 = smul.u32 2, %s28
        %s254 = smul.u32 32, %s28
        %p255 = scmp.lt.s32.totalorder %s27, 0
        %s256 = scalar_select %p255, %s27, 0
        %s257 = scalar_lea.vmem %s2, %s256
        %s258 = smul.u32 16, %s26
        %p260 = scmp.eq.s32.totalorder %s28, 0
        // Predicated region
        $region41: #{tpu_custom_call.1} parent=31 // pred_check
          %p261 = pneg %p260
        $region42: #{tpu_custom_call.1} parent=31 // pred_check_branch
          %263 = sbr.rel (%p261) target = $region44
        $region43: #{tpu_custom_call.1} parent=31 // pred_region
          %264 = vst [vmem:[#allocation2] sm:$0xff] 0.0
          %265 = vst [vmem:[#allocation2 + $0x8] sm:$0xff] 0.0
          %266 = vst [vmem:[#allocation2 + $0x10] sm:$0xff] 0.0
          %267 = vst [vmem:[#allocation2 + $0x18] sm:$0xff] 0.0
          %268 = vst [vmem:[#allocation2 + $0x20] sm:$0xff] 0.0
          %269 = vst [vmem:[#allocation2 + $0x28] sm:$0xff] 0.0
          %270 = vst [vmem:[#allocation2 + $0x30] sm:$0xff] 0.0
          %271 = vst [vmem:[#allocation2 + $0x38] sm:$0xff] 0.0
          %272 = vst [vmem:[#allocation2 + $0x40] sm:$0xff] 0.0
          %273 = vst [vmem:[#allocation2 + $0x48] sm:$0xff] 0.0
          %274 = vst [vmem:[#allocation2 + $0x50] sm:$0xff] 0.0
          %275 = vst [vmem:[#allocation2 + $0x58] sm:$0xff] 0.0
          %276 = vst [vmem:[#allocation2 + $0x60] sm:$0xff] 0.0
          %277 = vst [vmem:[#allocation2 + $0x68] sm:$0xff] 0.0
          %278 = vst [vmem:[#allocation2 + $0x70] sm:$0xff] 0.0
          %279 = vst [vmem:[#allocation2 + $0x78] sm:$0xff] 0.0
        $region44: #{tpu_custom_call.1} parent=31 // pred_fallthru
          _
        %v280 = vld [vmem:[#allocation2] sm:$0xff]
        %v281 = vld [vmem:[#allocation2 + $0x8] sm:$0xff]
        %v282 = vld [vmem:[#allocation2 + $0x10] sm:$0xff]
        %v283 = vld [vmem:[#allocation2 + $0x18] sm:$0xff]
        %v284 = vld [vmem:[#allocation2 + $0x20] sm:$0xff]
        %v285 = vld [vmem:[#allocation2 + $0x28] sm:$0xff]
        %v286 = vld [vmem:[#allocation2 + $0x30] sm:$0xff]
        %v287 = vld [vmem:[#allocation2 + $0x38] sm:$0xff]
        %v288 = vld [vmem:[#allocation2 + $0x40] sm:$0xff]
        %v289 = vld [vmem:[#allocation2 + $0x48] sm:$0xff]
        %v290 = vld [vmem:[#allocation2 + $0x50] sm:$0xff]
        %v291 = vld [vmem:[#allocation2 + $0x58] sm:$0xff]
        %v292 = vld [vmem:[#allocation2 + $0x60] sm:$0xff]
        %v293 = vld [vmem:[#allocation2 + $0x68] sm:$0xff]
        %v294 = vld [vmem:[#allocation2 + $0x70] sm:$0xff]
        %v295 = vld [vmem:[#allocation2 + $0x78] sm:$0xff]
        %v296 = vld [vmem:[%s222] sm:$0xff]
        %v297 = vld [vmem:[%s222 + $0x8] sm:$0xff]
        %v298 = vld [vmem:[%s222 + $0x10] sm:$0xff]
        %v299 = vld [vmem:[%s222 + $0x18] sm:$0xff]
        %v300 = vld [vmem:[%s222 + $0x20] sm:$0xff]
        %v301 = vld [vmem:[%s222 + $0x28] sm:$0xff]
        %v302 = vld [vmem:[%s222 + $0x30] sm:$0xff]
        %v303 = vld [vmem:[%s222 + $0x38] sm:$0xff]
        %v304 = vld [vmem:[%s222 + $0x40] sm:$0xff]
        %v305 = vld [vmem:[%s222 + $0x48] sm:$0xff]
        %v306 = vld [vmem:[%s222 + $0x50] sm:$0xff]
        %v307 = vld [vmem:[%s222 + $0x58] sm:$0xff]
        %v308 = vld [vmem:[%s222 + $0x60] sm:$0xff]
        %v309 = vld [vmem:[%s222 + $0x68] sm:$0xff]
        %v310 = vld [vmem:[%s222 + $0x70] sm:$0xff]
        %v311 = vld [vmem:[%s222 + $0x78] sm:$0xff]
        %v312 = vld [vmem:[#allocation6] sm:$0xf]
        %v313 = vld [vmem:[#allocation6 + $0x4] sm:$0xf]
        %v314 = vld [vmem:[#allocation6 + $0x8] sm:$0xf]
        %v315 = vld [vmem:[#allocation6 + $0xc] sm:$0xf]
        %v316 = vld [vmem:[#allocation6 + $0x10] sm:$0xf]
        %v317 = vld [vmem:[#allocation6 + $0x14] sm:$0xf]
        %v318 = vld [vmem:[#allocation6 + $0x18] sm:$0xf]
        %v319 = vld [vmem:[#allocation6 + $0x1c] sm:$0xf]
        %v320 = vld [vmem:[#allocation6 + $0x20] sm:$0xf]
        %v321 = vld [vmem:[#allocation6 + $0x24] sm:$0xf]
        %v322 = vld [vmem:[#allocation6 + $0x28] sm:$0xf]
        %v323 = vld [vmem:[#allocation6 + $0x2c] sm:$0xf]
        %v324 = vld [vmem:[#allocation6 + $0x30] sm:$0xf]
        %v325 = vld [vmem:[#allocation6 + $0x34] sm:$0xf]
        %v326 = vld [vmem:[#allocation6 + $0x38] sm:$0xf]
        %v327 = vld [vmem:[#allocation6 + $0x3c] sm:$0xf]
        %v328 = vld [vmem:[#allocation6 + $0x40] sm:$0xf]
        %v329 = vld [vmem:[#allocation6 + $0x44] sm:$0xf]
        %v330 = vld [vmem:[#allocation6 + $0x48] sm:$0xf]
        %v331 = vld [vmem:[#allocation6 + $0x4c] sm:$0xf]
        %v332 = vld [vmem:[#allocation6 + $0x50] sm:$0xf]
        %v333 = vld [vmem:[#allocation6 + $0x54] sm:$0xf]
        %v334 = vld [vmem:[#allocation6 + $0x58] sm:$0xf]
        %v335 = vld [vmem:[#allocation6 + $0x5c] sm:$0xf]
        %v336 = vld [vmem:[#allocation6 + $0x60] sm:$0xf]
        %v337 = vld [vmem:[#allocation6 + $0x64] sm:$0xf]
        %v338 = vld [vmem:[#allocation6 + $0x68] sm:$0xf]
        %v339 = vld [vmem:[#allocation6 + $0x6c] sm:$0xf]
        %v340 = vld [vmem:[#allocation6 + $0x70] sm:$0xf]
        %v341 = vld [vmem:[#allocation6 + $0x74] sm:$0xf]
        %v342 = vld [vmem:[#allocation6 + $0x78] sm:$0xf]
        %v343 = vld [vmem:[#allocation6 + $0x7c] sm:$0xf]
        %v360 = vunpack.c.l.b16 %v296
        %v361 = vunpack.c.h.b16 %v296
        %v362 = vunpack.c.l.b16 %v297
        %v363 = vunpack.c.h.b16 %v297
        %v364 = vunpack.c.l.b16 %v298
        %v365 = vunpack.c.h.b16 %v298
        %v366 = vunpack.c.l.b16 %v299
        %v367 = vunpack.c.h.b16 %v299
        %v368 = vunpack.c.l.b16 %v300
        %v369 = vunpack.c.h.b16 %v300
        %v370 = vunpack.c.l.b16 %v301
        %v371 = vunpack.c.h.b16 %v301
        %v372 = vunpack.c.l.b16 %v302
        %v373 = vunpack.c.h.b16 %v302
        %v374 = vunpack.c.l.b16 %v303
        %v375 = vunpack.c.h.b16 %v303
        %v376 = vunpack.c.l.b16 %v304
        %v377 = vunpack.c.h.b16 %v304
        %v378 = vunpack.c.l.b16 %v305
        %v379 = vunpack.c.h.b16 %v305
        %v380 = vunpack.c.l.b16 %v306
        %v381 = vunpack.c.h.b16 %v306
        %v382 = vunpack.c.l.b16 %v307
        %v383 = vunpack.c.h.b16 %v307
        %v384 = vunpack.c.l.b16 %v308
        %v385 = vunpack.c.h.b16 %v308
        %v386 = vunpack.c.l.b16 %v309
        %v387 = vunpack.c.h.b16 %v309
        %v388 = vunpack.c.l.b16 %v310
        %v389 = vunpack.c.h.b16 %v310
        %v390 = vunpack.c.l.b16 %v311
        %v391 = vunpack.c.h.b16 %v311
        %v392 = vpack.c.b16 %v362, %v360
        %v393 = vpack.c.b16 %v363, %v361
        %v394 = vpack.c.b16 %v366, %v364
        %v395 = vpack.c.b16 %v367, %v365
        %v396 = vpack.c.b16 %v370, %v368
        %v397 = vpack.c.b16 %v371, %v369
        %v398 = vpack.c.b16 %v374, %v372
        %v399 = vpack.c.b16 %v375, %v373
        %v400 = vpack.c.b16 %v378, %v376
        %v401 = vpack.c.b16 %v379, %v377
        %v402 = vpack.c.b16 %v382, %v380
        %v403 = vpack.c.b16 %v383, %v381
        %v404 = vpack.c.b16 %v386, %v384
        %v405 = vpack.c.b16 %v387, %v385
        %v406 = vpack.c.b16 %v390, %v388
        %v407 = vpack.c.b16 %v391, %v389
        %v456 = vunpack.c.l.b16 %v312
        %v457 = vunpack.c.l.b16 %v313
        %v458 = vunpack.c.l.b16 %v314
        %v459 = vunpack.c.l.b16 %v315
        %v460 = vunpack.c.l.b16 %v316
        %v461 = vunpack.c.l.b16 %v317
        %v462 = vunpack.c.l.b16 %v318
        %v463 = vunpack.c.l.b16 %v319
        %v464 = vunpack.c.l.b16 %v320
        %v465 = vunpack.c.l.b16 %v321
        %v466 = vunpack.c.l.b16 %v322
        %v467 = vunpack.c.l.b16 %v323
        %v468 = vunpack.c.l.b16 %v324
        %v469 = vunpack.c.l.b16 %v325
        %v470 = vunpack.c.l.b16 %v326
        %v471 = vunpack.c.l.b16 %v327
        %v472 = vunpack.c.l.b16 %v328
        %v473 = vunpack.c.l.b16 %v329
        %v474 = vunpack.c.l.b16 %v330
        %v475 = vunpack.c.l.b16 %v331
        %v476 = vunpack.c.l.b16 %v332
        %v477 = vunpack.c.l.b16 %v333
        %v478 = vunpack.c.l.b16 %v334
        %v479 = vunpack.c.l.b16 %v335
        %v480 = vunpack.c.l.b16 %v336
        %v481 = vunpack.c.l.b16 %v337
        %v482 = vunpack.c.l.b16 %v338
        %v483 = vunpack.c.l.b16 %v339
        %v484 = vunpack.c.l.b16 %v340
        %v485 = vunpack.c.l.b16 %v341
        %v486 = vunpack.c.l.b16 %v342
        %v487 = vunpack.c.l.b16 %v343
        %v488 = vpack.c.b16 %v457, %v456
        %v489 = vpack.c.b16 %v459, %v458
        %v490 = vpack.c.b16 %v461, %v460
        %v491 = vpack.c.b16 %v463, %v462
        %v492 = vpack.c.b16 %v465, %v464
        %v493 = vpack.c.b16 %v467, %v466
        %v494 = vpack.c.b16 %v469, %v468
        %v495 = vpack.c.b16 %v471, %v470
        %v496 = vpack.c.b16 %v473, %v472
        %v497 = vpack.c.b16 %v475, %v474
        %v498 = vpack.c.b16 %v477, %v476
        %v499 = vpack.c.b16 %v479, %v478
        %v500 = vpack.c.b16 %v481, %v480
        %v501 = vpack.c.b16 %v483, %v482
        %v502 = vpack.c.b16 %v485, %v484
        %v503 = vpack.c.b16 %v487, %v486
        %520 = vmatprep.subr.bf16.mxu0 0
        %521 = vmatpush1.bf16.msra.mxu0 %v495
        %522 = vmatprep.subr.bf16.mxu0 0
        %523 = vmatpush1.bf16.msra.mxu0 %v494
        %524 = vmatprep.subr.bf16.mxu0 0
        %525 = vmatpush1.bf16.msra.mxu0 %v493
        %526 = vmatprep.subr.bf16.mxu0 0
        %527 = vmatpush1.bf16.msra.mxu0 %v492
        %528 = vmatprep.subr.bf16.mxu0 0
        %529 = vmatpush1.bf16.msra.mxu0 %v491
        %530 = vmatprep.subr.bf16.mxu0 0
        %531 = vmatpush1.bf16.msra.mxu0 %v490
        %532 = vmatprep.subr.bf16.mxu0 0
        %533 = vmatpush1.bf16.msra.mxu0 %v489
        %534 = vmatprep.subr.bf16.mxu0 0
        %535 = vmatpush1.bf16.msra.mxu0 %v488
        %536 = vmatprep.subr.bf16.mxu0 0
        %537 = vmatpush2.bf16.msra.mxu0 %v503
        %538 = vmatprep.subr.bf16.mxu0 0
        %539 = vmatpush2.bf16.msra.mxu0 %v502
        %540 = vmatprep.subr.bf16.mxu0 0
        %541 = vmatpush2.bf16.msra.mxu0 %v501
        %542 = vmatprep.subr.bf16.mxu0 0
        %543 = vmatpush2.bf16.msra.mxu0 %v500
        %544 = vmatprep.subr.bf16.mxu0 0
        %545 = vmatpush2.bf16.msra.mxu0 %v499
        %546 = vmatprep.subr.bf16.mxu0 0
        %547 = vmatpush2.bf16.msra.mxu0 %v498
        %548 = vmatprep.subr.bf16.mxu0 0
        %549 = vmatpush2.bf16.msra.mxu0 %v497
        %550 = vmatprep.subr.bf16.mxu0 0
        %551 = vmatpush2.bf16.msra.mxu0 %v496
        %552 = vmatprep.mubr.bf16.mxu0 %v393
        %553 = vmatmul.mubr.bf16.gmra.mxu0 %v392
        %v554 = vpop.f32.mrf.mxu0
        %v555 = vadd.f32 0.0, %v554
        %v556 = vpop.f32.mrf.mxu0
        %v557 = vpop.f32.mrf.mxu0
        %v558 = vadd.f32 0.0, %v557
        %v559 = vpop.f32.mrf.mxu0
        %560 = vmatprep.mubr.bf16.mxu0 %v395
        %561 = vmatmul.mubr.bf16.gmra.mxu0 %v394
        %v562 = vpop.f32.mrf.mxu0
        %v563 = vadd.f32 0.0, %v562
        %v564 = vpop.f32.mrf.mxu0
        %v565 = vpop.f32.mrf.mxu0
        %v566 = vadd.f32 0.0, %v565
        %v567 = vpop.f32.mrf.mxu0
        %568 = vmatprep.mubr.bf16.mxu0 %v397
        %569 = vmatmul.mubr.bf16.gmra.mxu0 %v396
        %v570 = vpop.f32.mrf.mxu0
        %v571 = vadd.f32 0.0, %v570
        %v572 = vpop.f32.mrf.mxu0
        %v573 = vpop.f32.mrf.mxu0
        %v574 = vadd.f32 0.0, %v573
        %v575 = vpop.f32.mrf.mxu0
        %576 = vmatprep.mubr.bf16.mxu0 %v399
        %577 = vmatmul.mubr.bf16.gmra.mxu0 %v398
        %v578 = vpop.f32.mrf.mxu0
        %v579 = vadd.f32 0.0, %v578
        %v580 = vpop.f32.mrf.mxu0
        %v581 = vpop.f32.mrf.mxu0
        %v582 = vadd.f32 0.0, %v581
        %v583 = vpop.f32.mrf.mxu0
        %584 = vmatprep.mubr.bf16.mxu0 %v401
        %585 = vmatmul.mubr.bf16.gmra.mxu0 %v400
        %v586 = vpop.f32.mrf.mxu0
        %v587 = vadd.f32 0.0, %v586
        %v588 = vpop.f32.mrf.mxu0
        %v589 = vpop.f32.mrf.mxu0
        %v590 = vadd.f32 0.0, %v589
        %v591 = vpop.f32.mrf.mxu0
        %592 = vmatprep.mubr.bf16.mxu0 %v403
        %593 = vmatmul.mubr.bf16.gmra.mxu0 %v402
        %v594 = vpop.f32.mrf.mxu0
        %v595 = vadd.f32 0.0, %v594
        %v596 = vpop.f32.mrf.mxu0
        %v597 = vpop.f32.mrf.mxu0
        %v598 = vadd.f32 0.0, %v597
        %v599 = vpop.f32.mrf.mxu0
        %600 = vmatprep.mubr.bf16.mxu0 %v405
        %601 = vmatmul.mubr.bf16.gmra.mxu0 %v404
        %v602 = vpop.f32.mrf.mxu0
        %v603 = vadd.f32 0.0, %v602
        %v604 = vpop.f32.mrf.mxu0
        %v605 = vpop.f32.mrf.mxu0
        %v606 = vadd.f32 0.0, %v605
        %v607 = vpop.f32.mrf.mxu0
        %608 = vmatprep.mubr.bf16.mxu0 %v407
        %609 = vmatmul.mubr.bf16.gmra.mxu0 %v406
        %v610 = vpop.f32.mrf.mxu0
        %v611 = vadd.f32 0.0, %v610
        %v612 = vpop.f32.mrf.mxu0
        %v613 = vpop.f32.mrf.mxu0
        %v614 = vadd.f32 0.0, %v613
        %v615 = vpop.f32.mrf.mxu0
        %616 = vdwg.mxu0
        %v617 = vadd.f32 %v280, %v555
        %v618 = vadd.f32 %v281, %v558
        %v619 = vadd.f32 %v282, %v563
        %v620 = vadd.f32 %v283, %v566
        %v621 = vadd.f32 %v284, %v571
        %v622 = vadd.f32 %v285, %v574
        %v623 = vadd.f32 %v286, %v579
        %v624 = vadd.f32 %v287, %v582
        %v625 = vadd.f32 %v288, %v587
        %v626 = vadd.f32 %v289, %v590
        %v627 = vadd.f32 %v290, %v595
        %v628 = vadd.f32 %v291, %v598
        %v629 = vadd.f32 %v292, %v603
        %v630 = vadd.f32 %v293, %v606
        %v631 = vadd.f32 %v294, %v611
        %v632 = vadd.f32 %v295, %v614
        %633 = vst [vmem:[#allocation2] sm:$0xff] %v617
        %634 = vst [vmem:[#allocation2 + $0x8] sm:$0xff] %v618
        %635 = vst [vmem:[#allocation2 + $0x10] sm:$0xff] %v619
        %636 = vst [vmem:[#allocation2 + $0x18] sm:$0xff] %v620
        %637 = vst [vmem:[#allocation2 + $0x20] sm:$0xff] %v621
        %638 = vst [vmem:[#allocation2 + $0x28] sm:$0xff] %v622
        %639 = vst [vmem:[#allocation2 + $0x30] sm:$0xff] %v623
        %640 = vst [vmem:[#allocation2 + $0x38] sm:$0xff] %v624
        %641 = vst [vmem:[#allocation2 + $0x40] sm:$0xff] %v625
        %642 = vst [vmem:[#allocation2 + $0x48] sm:$0xff] %v626
        %643 = vst [vmem:[#allocation2 + $0x50] sm:$0xff] %v627
        %644 = vst [vmem:[#allocation2 + $0x58] sm:$0xff] %v628
        %645 = vst [vmem:[#allocation2 + $0x60] sm:$0xff] %v629
        %646 = vst [vmem:[#allocation2 + $0x68] sm:$0xff] %v630
        %647 = vst [vmem:[#allocation2 + $0x70] sm:$0xff] %v631
        %648 = vst [vmem:[#allocation2 + $0x78] sm:$0xff] %v632
        // Predicated region
        $region45: #{tpu_custom_call.1} parent=31 // pred_check
          %p649 = pneg %p260
        $region46: #{tpu_custom_call.1} parent=31 // pred_check_branch
          %651 = sbr.rel (%p649) target = $region48
        $region47: #{tpu_custom_call.1} parent=31 // pred_region
          %v652 = vld [vmem:[#allocation2] sm:$0xff]
          %v653 = vld [vmem:[#allocation2 + $0x8] sm:$0xff]
          %v654 = vld [vmem:[#allocation2 + $0x10] sm:$0xff]
          %v655 = vld [vmem:[#allocation2 + $0x18] sm:$0xff]
          %v656 = vld [vmem:[#allocation2 + $0x20] sm:$0xff]
          %v657 = vld [vmem:[#allocation2 + $0x28] sm:$0xff]
          %v658 = vld [vmem:[#allocation2 + $0x30] sm:$0xff]
          %v659 = vld [vmem:[#allocation2 + $0x38] sm:$0xff]
          %v660 = vld [vmem:[#allocation2 + $0x40] sm:$0xff]
          %v661 = vld [vmem:[#allocation2 + $0x48] sm:$0xff]
          %v662 = vld [vmem:[#allocation2 + $0x50] sm:$0xff]
          %v663 = vld [vmem:[#allocation2 + $0x58] sm:$0xff]
          %v664 = vld [vmem:[#allocation2 + $0x60] sm:$0xff]
          %v665 = vld [vmem:[#allocation2 + $0x68] sm:$0xff]
          %v666 = vld [vmem:[#allocation2 + $0x70] sm:$0xff]
          %v667 = vld [vmem:[#allocation2 + $0x78] sm:$0xff]
          %v668 = vld [vmem:[%s257] sm:$0x1]
          %v670 = vlaneseq
          %v671 = vshrl.u32 %v670, 7
          %v672 = vsub.s32 0, %v671
          %v673 = vrot.slane %v668, %v672
          %v675 = vadd.f32 %v652, %v673
          %v676 = vadd.f32 %v653, %v673
          %v677 = vadd.f32 %v654, %v673
          %v678 = vadd.f32 %v655, %v673
          %v679 = vadd.f32 %v656, %v673
          %v680 = vadd.f32 %v657, %v673
          %v681 = vadd.f32 %v658, %v673
          %v682 = vadd.f32 %v659, %v673
          %v683 = vadd.f32 %v660, %v673
          %v684 = vadd.f32 %v661, %v673
          %v685 = vadd.f32 %v662, %v673
          %v686 = vadd.f32 %v663, %v673
          %v687 = vadd.f32 %v664, %v673
          %v688 = vadd.f32 %v665, %v673
          %v689 = vadd.f32 %v666, %v673
          %v690 = vadd.f32 %v667, %v673
          %v691 = vmax.f32 %v675, 0.0
          %v692 = vmax.f32 %v676, 0.0
          %v693 = vmax.f32 %v677, 0.0
          %v694 = vmax.f32 %v678, 0.0
          %v695 = vmax.f32 %v679, 0.0
          %v696 = vmax.f32 %v680, 0.0
          %v697 = vmax.f32 %v681, 0.0
          %v698 = vmax.f32 %v682, 0.0
          %v699 = vmax.f32 %v683, 0.0
          %v700 = vmax.f32 %v684, 0.0
          %v701 = vmax.f32 %v685, 0.0
          %v702 = vmax.f32 %v686, 0.0
          %v703 = vmax.f32 %v687, 0.0
          %v704 = vmax.f32 %v688, 0.0
          %v705 = vmax.f32 %v689, 0.0
          %v706 = vmax.f32 %v690, 0.0
          %707 = vst [vmem:[%s251] sm:$0xff] %v691
          %708 = vst [vmem:[%s251 + $0x8] sm:$0xff] %v692
          %709 = vst [vmem:[%s251 + $0x10] sm:$0xff] %v693
          %710 = vst [vmem:[%s251 + $0x18] sm:$0xff] %v694
          %711 = vst [vmem:[%s251 + $0x20] sm:$0xff] %v695
          %712 = vst [vmem:[%s251 + $0x28] sm:$0xff] %v696
          %713 = vst [vmem:[%s251 + $0x30] sm:$0xff] %v697
          %714 = vst [vmem:[%s251 + $0x38] sm:$0xff] %v698
          %715 = vst [vmem:[%s251 + $0x40] sm:$0xff] %v699
          %716 = vst [vmem:[%s251 + $0x48] sm:$0xff] %v700
          %717 = vst [vmem:[%s251 + $0x50] sm:$0xff] %v701
          %718 = vst [vmem:[%s251 + $0x58] sm:$0xff] %v702
          %719 = vst [vmem:[%s251 + $0x60] sm:$0xff] %v703
          %720 = vst [vmem:[%s251 + $0x68] sm:$0xff] %v704
          %721 = vst [vmem:[%s251 + $0x70] sm:$0xff] %v705
          %722 = vst [vmem:[%s251 + $0x78] sm:$0xff] %v706
        $region48: #{tpu_custom_call.1} parent=31 // pred_fallthru
          _
        %s723 = sand.u32 %s132, 1
        %s724 = scalar_lea.sflag [#allocation5], %s723
        %s725 = sand.u32 %s132, 1
        %s726 = smul.addr %s725, 128
        %s727 = scalar_lea.vmem [#allocation8], %s726
        // Predicated region
        $region49: #{tpu_custom_call.1} parent=31 // pred_check
          %p728 = pneg %p142
        $region50: #{tpu_custom_call.1} parent=31 // pred_check_branch
          %730 = sbr.rel (%p728) target = $region52
        $region51: #{tpu_custom_call.1} parent=31 // pred_region
          %s731 = smul.u32 16, %s26
          %s733 = ssub.s32 2048, 2048
          %734 = vsyncadd %s724, %s733
          %s735 = sadd.s32 %s27, %s731
          %s736 = smul.addr %s735, 128
          %s737 = scalar_lea.hbm %s3, %s736
          %s738 = sshll.u32 %s727, 4
          %s739 = int_to_ptr.vmem [resolvable:$true] %s738
          %744 = dma.vmem_to_hbm [thread:$0]  %s739, 2048, %s737, %s724, 128, 128, 8
        $region52: #{tpu_custom_call.1} parent=31 // pred_fallthru
          _
      $region32: #{tpu_custom_call.1} parent=5 // pred_fallthru
        _
      %p745 = scmp.le.s32.totalorder 2, %s16
      // Predicated region
      $region53: #{tpu_custom_call.1} parent=5 // pred_check
        %p746 = pneg %p745
      $region54: #{tpu_custom_call.1} parent=5 // pred_check_branch
        %748 = sbr.rel (%p746) target = $region56
      $region55: #{tpu_custom_call.1} parent=5 // pred_region
        %s749 = ssub.s32 %s16, 2
        // Predicated region
        $region57: #{tpu_custom_call.1} parent=55 // pred_check
          %p750 = pneg %p148
        $region58: #{tpu_custom_call.1} parent=55 // pred_check_branch
          %752 = sbr.rel (%p750) target = $region60
        $region59: #{tpu_custom_call.1} parent=55 // pred_region
          %s753 = sand.u32 %s133, 1
          %s754 = scalar_lea.sflag [#allocation5], %s753
          %s755 = sand.u32 %s133, 1
          %s756 = smul.addr %s755, 128
          %s757 = scalar_lea.vmem [#allocation8], %s756
          %758 = dma.done %s754, 2048
        $region60: #{tpu_custom_call.1} parent=55 // pred_fallthru
          _
      $region56: #{tpu_custom_call.1} parent=5 // pred_fallthru
        _
    $region6: #{tpu_custom_call.1} parent=1 // loop_footer
      %s20 = sadd.s32 1, %s16
    $region7: #{tpu_custom_call.1} parent=1 // loop_footer_branch
      %15 = sbr.rel target = $region3
    $region8: #{tpu_custom_call.1} parent=1 // loop_exit
      _
    %759 = vsyncpa [#allocation4], 1
    %s760 = scalar_lea.sflag [#allocation4], 1
    %761 = vsyncpa %s760, 1
    %762 = vsyncpa [#allocation7], 1
    %763 = vsyncpa [#allocation5], 1
    %s764 = scalar_lea.sflag [#allocation5], 1
    %765 = vsyncpa %s764, 1

</llo_original>
